<compile_context>
chip_gen: v7x
topology: tpu7x:2x2x1
jax: 0.10.0
libtpu: 0.0.40
codegen_flags: <defaults>
</compile_context>

<pallas_src>
import jax
import jax.numpy as jnp
from jax.experimental import pallas as pl
from jax.experimental.pallas import tpu as pltpu

LANE = 128      # vreg lane width
SUBLANE = 8     # f32 sublane count


def _round_up(n, m):
    return ((n + m - 1) // m) * m


# --------------------------------------------------------------------------
# Kernel
# --------------------------------------------------------------------------
def _vae_kernel(x_ref, eps_ref, w1_ref, b1_ref, w3_ref, b3_ref,
                z_ref, mu_ref, lv_ref):
    # Hidden layer: relu(x @ W1 + b1).  bf16 operands (cast hidden under the
    # MXU/DMA pipeline), f32 accumulation; bias add + relu stay f32 on the VPU.
    x_bf = x_ref[...].astype(jnp.bfloat16)
    h1 = jnp.dot(x_bf, w1_ref[...], preferred_element_type=jnp.float32)
    h1 = jnp.maximum(h1 + b1_ref[...], 0.0)

    # Fused heads: one MXU pass producing [mu | log_var] at 128-lane-aligned
    # offsets (each head zero-padded to a full 128 lanes).
    head = jnp.dot(h1.astype(jnp.bfloat16), w3_ref[...],
                   preferred_element_type=jnp.float32)
    head = head + b3_ref[...]

    mu = head[:, :LANE]             # full-vreg, lane-aligned slice
    lv = head[:, LANE:2 * LANE]     # full-vreg, lane-aligned slice

    # Reparameterization at full 128-lane width (padding lanes are harmless:
    # lv pad = 0 -> exp = 1, mu pad = 0 -> z pad = eps; wrapper slices :z_dim).
    z = eps_ref[...] * jnp.exp(0.5 * lv) + mu   # exp -> EUP, rest f32 VPU

    z_ref[...] = z
    mu_ref[...] = mu
    lv_ref[...] = lv


# --------------------------------------------------------------------------
# Host-side parameter packing (fuse heads at 128-lane offsets, cast to bf16)
# --------------------------------------------------------------------------
def pack_params(params, x_dim, h_dim1, z_dim):
    assert z_dim <= LANE, "z_dim must fit in one 128-lane head slot"
    fw = 2 * LANE

    w3 = jnp.zeros((h_dim1, fw), jnp.float32)
    w3 = w3.at[:, 0:z_dim].set(params["w31"])            # mu  @ lanes [0,128)
    w3 = w3.at[:, LANE:LANE + z_dim].set(params["w32"])  # lv  @ lanes [128,256)
    b3 = jnp.zeros((1, fw), jnp.float32)
    b3 = b3.at[:, 0:z_dim].set(params["b31"])
    b3 = b3.at[:, LANE:LANE + z_dim].set(params["b32"])

    return {
        "w1": params["w1"].astype(jnp.bfloat16),  # matmul operands in bf16
        "b1": params["b1"],                       # biases stay f32
        "w3": w3.astype(jnp.bfloat16),
        "b3": b3,
    }


# --------------------------------------------------------------------------
# Wrapper
# --------------------------------------------------------------------------
def vae_forward(x, packed, z_dim, key, block_b=1024):
    """x: [B, x_dim] f32; packed: output of pack_params; returns (z, mu, log_var)."""
    B, x_dim = x.shape
    h_dim1 = packed["w1"].shape[1]
    fw = packed["w3"].shape[1]                     # 2 * LANE

    # Even grid step count >= 2 (v7x megacore), sublane-aligned batch tile.
    nb = max(2, pl.cdiv(B, block_b))
    if nb % 2:
        nb += 1
    tb = _round_up(pl.cdiv(B, nb), SUBLANE)
    bp = nb * tb

    # Pad the batch axis only when the grid requires it; x stays f32/unpadded
    # in the feature axis (block last-dim == full array dim is legal).
    x_in = x if bp == B else jnp.zeros((bp, x_dim), x.dtype).at[:B].set(x)
    eps = jax.random.normal(key, (bp, LANE), jnp.float32)

    def nbytes(a):
        return a.size * a.dtype.itemsize

    w_bytes = (nbytes(packed["w1"]) + nbytes(packed["b1"])
               + nbytes(packed["w3"]) + nbytes(packed["b3"]))
    vmem_bytes = int(
        2 * tb * x_dim * 4          # x tile (f32), double-buffered
        + 2 * tb * LANE * 4         # eps tile
        + 2 * 3 * tb * LANE * 4     # three output tiles
        + 2 * w_bytes               # resident weights (default buffering)
        + (4 << 20))                # slack

    cost = pl.CostEstimate(
        flops=2 * bp * (x_dim * h_dim1 + h_dim1 * fw),
        transcendentals=bp * LANE,
        bytes_accessed=int(nbytes(x_in) + nbytes(eps)
                           + 3 * bp * LANE * 4 + w_bytes),
    )

    z, mu, lv = pl.pallas_call(
        _vae_kernel,
        out_shape=(
            jax.ShapeDtypeStruct((bp, LANE), jnp.float32),   # z
            jax.ShapeDtypeStruct((bp, LANE), jnp.float32),   # mu
            jax.ShapeDtypeStruct((bp, LANE), jnp.float32),   # log_var
        ),
        grid_spec=pltpu.PrefetchScalarGridSpec(
            num_scalar_prefetch=0,
            grid=(nb,),
            in_specs=[
                pl.BlockSpec((tb, x_dim), lambda i: (i, 0)),     # x: batch-tiled
                pl.BlockSpec((tb, LANE), lambda i: (i, 0)),      # eps: batch-tiled
                pl.BlockSpec((x_dim, h_dim1), lambda i: (0, 0)), # W1: resident
                pl.BlockSpec((1, h_dim1), lambda i: (0, 0)),     # b1: resident
                pl.BlockSpec((h_dim1, fw), lambda i: (0, 0)),    # fused W3
                pl.BlockSpec((1, fw), lambda i: (0, 0)),         # fused b3
            ],
            out_specs=[
                pl.BlockSpec((tb, LANE), lambda i: (i, 0)),
                pl.BlockSpec((tb, LANE), lambda i: (i, 0)),
                pl.BlockSpec((tb, LANE), lambda i: (i, 0)),
            ],
        ),
        compiler_params=pltpu.CompilerParams(
            dimension_semantics=("parallel",),   # batch axis across TCs
            vmem_limit_bytes=vmem_bytes,
        ),
        cost_estimate=cost,
    )(x_in, eps, packed["w1"], packed["b1"], packed["w3"], packed["b3"])

    return (z[:B, :z_dim], mu[:B, :z_dim], lv[:B, :z_dim]), eps


# --------------------------------------------------------------------------
# Deterministic synthetic init (PyTorch-Linear-like uniform fan-in scaling)
# --------------------------------------------------------------------------
def init_params(key, x_dim, h_dim1, z_dim):
    ks = jax.random.split(key, 6)

    def linear(kw, kb, fan_in, fan_out):
        bound = 1.0 / jnp.sqrt(fan_in)
        w = jax.random.uniform(kw, (fan_in, fan_out), jnp.float32, -bound, bound)
        b = jax.random.uniform(kb, (1, fan_out), jnp.float32, -bound, bound)
        return w, b

    w1, b1 = linear(ks[0], ks[1], x_dim, h_dim1)
    w31, b31 = linear(ks[2], ks[3], h_dim1, z_dim)
    w32, b32 = linear(ks[4], ks[5], h_dim1, z_dim)
    return {"w1": w1, "b1": b1, "w31": w31, "b31": b31, "w32": w32, "b32": b32}


if __name__ == "__main__":
    # Small shapes consistent with the module; B chosen so the batch grid has
    # two steps (exercises tiling, pipelining and the v7x even-grid rule).
    # h_dim2 is unused by forward(), matching the PyTorch module.
    B, X_DIM, H_DIM1, H_DIM2, Z_DIM = 512, 64, 32, 32, 16

    key = jax.random.PRNGKey(0)
    k_params, k_x, k_eps = jax.random.split(key, 3)

    params = init_params(k_params, X_DIM, H_DIM1, Z_DIM)
    packed = pack_params(params, X_DIM, H_DIM1, Z_DIM)
    x = jax.random.normal(k_x, (B, X_DIM), jnp.float32)

    (z, mu, log_var), eps = vae_forward(x, packed, Z_DIM, k_eps, block_b=1024)
    jax.block_until_ready((z, mu, log_var))

    # Reference with identical numerics (bf16 matmul operands, f32 accumulate,
    # same eps stream).  Note: mu/log_var use bf16 operands by design; vs. the
    # f32 PyTorch module this is ~1e-2 relative drift — acceptable for a VAE.
    x_bf = x.astype(jnp.bfloat16)
    h1_ref = jnp.maximum(
        jnp.dot(x_bf, packed["w1"], preferred_element_type=jnp.float32)
        + packed["b1"], 0.0)
    head_ref = jnp.dot(h1_ref.astype(jnp.bfloat16), packed["w3"],
                       preferred_element_type=jnp.float32) + packed["b3"]
    mu_ref = head_ref[:, :Z_DIM]
    lv_ref = head_ref[:, LANE:LANE + Z_DIM]
    z_ref = eps[:B, :Z_DIM] * jnp.exp(0.5 * lv_ref) + mu_ref

    assert jnp.allclose(mu, mu_ref, atol=1e-2, rtol=1e-2), "mu mismatch"
    assert jnp.allclose(log_var, lv_ref, atol=1e-2, rtol=1e-2), "log_var mismatch"
    assert jnp.allclose(z, z_ref, atol=1e-2, rtol=1e-2), "z mismatch"
    assert bool(jnp.all(jnp.isfinite(z))), "z not finite"

    print("KERNEL_OK")
</pallas_src>

<mosaic_0001>
module attributes {stable_mosaic.version = 11 : i64} {
  func.func @_vae_kernel(%arg0: i32, %arg1: memref<256x64xf32, #tpu.memory_space<vmem>>, %arg2: memref<256x128xf32, #tpu.memory_space<vmem>>, %arg3: memref<64x32xbf16, #tpu.memory_space<vmem>>, %arg4: memref<1x32xf32, #tpu.memory_space<vmem>>, %arg5: memref<32x256xbf16, #tpu.memory_space<vmem>>, %arg6: memref<1x256xf32, #tpu.memory_space<vmem>>, %arg7: memref<256x128xf32, #tpu.memory_space<vmem>>, %arg8: memref<256x128xf32, #tpu.memory_space<vmem>>, %arg9: memref<256x128xf32, #tpu.memory_space<vmem>>) attributes {dimension_semantics = [#tpu.dimension_semantics<parallel>], iteration_bounds = array<i64: 2>, scalar_prefetch = 0 : i64, scratch_operands = 0 : i64, tpu.core_type = #tpu.core_type<tc>, window_params = [{transform_indices = @transform_0, window_bounds = array<i64: 256, 64>}, {transform_indices = @transform_1, window_bounds = array<i64: 256, 128>}, {pipeline_mode = #tpu.pipeline_mode<synchronous>, transform_indices = @transform_2, window_bounds = array<i64: 64, 32>}, {pipeline_mode = #tpu.pipeline_mode<synchronous>, transform_indices = @transform_3, window_bounds = array<i64: 1, 32>}, {pipeline_mode = #tpu.pipeline_mode<synchronous>, transform_indices = @transform_4, window_bounds = array<i64: 32, 256>}, {pipeline_mode = #tpu.pipeline_mode<synchronous>, transform_indices = @transform_5, window_bounds = array<i64: 1, 256>}, {transform_indices = @transform_6, window_bounds = array<i64: 256, 128>}, {transform_indices = @transform_7, window_bounds = array<i64: 256, 128>}, {transform_indices = @transform_8, window_bounds = array<i64: 256, 128>}]} {
    %c0 = arith.constant 0 : index
    %c0_0 = arith.constant 0 : index
    %0 = vector.load %arg1[%c0, %c0_0] : memref<256x64xf32, #tpu.memory_space<vmem>>, vector<256x64xf32>
    %1 = arith.truncf %0 : vector<256x64xf32> to vector<256x64xbf16>
    %c0_1 = arith.constant 0 : index
    %c0_2 = arith.constant 0 : index
    %2 = vector.load %arg3[%c0_1, %c0_2] : memref<64x32xbf16, #tpu.memory_space<vmem>>, vector<64x32xbf16>
    %cst = arith.constant dense<0.000000e+00> : vector<256x32xf32>
    %3 = tpu.matmul %1, %2, %cst {dimension_numbers = #tpu.dot_dimension_numbers<[1], [0], [0], [1], [0, 0, 1, 1], [], []>} : vector<256x64xbf16>, vector<64x32xbf16>, vector<256x32xf32> -> vector<256x32xf32>
    %c0_3 = arith.constant 0 : index
    %c0_4 = arith.constant 0 : index
    %4 = vector.load %arg4[%c0_3, %c0_4] : memref<1x32xf32, #tpu.memory_space<vmem>>, vector<1x32xf32>
    %5 = vector.broadcast %4 : vector<1x32xf32> to vector<256x32xf32>
    %6 = arith.addf %3, %5 : vector<256x32xf32>
    %cst_5 = arith.constant 0.000000e+00 : f32
    %7 = vector.broadcast %cst_5 : f32 to vector<256x32xf32>
    %8 = arith.maximumf %6, %7 : vector<256x32xf32>
    %9 = arith.truncf %8 : vector<256x32xf32> to vector<256x32xbf16>
    %c0_6 = arith.constant 0 : index
    %c0_7 = arith.constant 0 : index
    %10 = vector.load %arg5[%c0_6, %c0_7] : memref<32x256xbf16, #tpu.memory_space<vmem>>, vector<32x256xbf16>
    %cst_8 = arith.constant dense<0.000000e+00> : vector<256x256xf32>
    %11 = tpu.matmul %9, %10, %cst_8 {dimension_numbers = #tpu.dot_dimension_numbers<[1], [0], [0], [1], [0, 0, 1, 1], [], []>} : vector<256x32xbf16>, vector<32x256xbf16>, vector<256x256xf32> -> vector<256x256xf32>
    %c0_9 = arith.constant 0 : index
    %c0_10 = arith.constant 0 : index
    %12 = vector.load %arg6[%c0_9, %c0_10] : memref<1x256xf32, #tpu.memory_space<vmem>>, vector<1x256xf32>
    %13 = vector.broadcast %12 : vector<1x256xf32> to vector<256x256xf32>
    %14 = arith.addf %11, %13 : vector<256x256xf32>
    %15 = vector.extract_strided_slice %14 {offsets = [0, 0], sizes = [256, 128], strides = [1, 1]} : vector<256x256xf32> to vector<256x128xf32>
    %16 = vector.extract_strided_slice %14 {offsets = [0, 128], sizes = [256, 128], strides = [1, 1]} : vector<256x256xf32> to vector<256x128xf32>
    %c0_11 = arith.constant 0 : index
    %c0_12 = arith.constant 0 : index
    %17 = vector.load %arg2[%c0_11, %c0_12] : memref<256x128xf32, #tpu.memory_space<vmem>>, vector<256x128xf32>
    %cst_13 = arith.constant 5.000000e-01 : f32
    %18 = vector.broadcast %cst_13 : f32 to vector<256x128xf32>
    %19 = arith.mulf %18, %16 : vector<256x128xf32>
    %20 = math.exp %19 : vector<256x128xf32>
    %21 = arith.mulf %17, %20 : vector<256x128xf32>
    %22 = arith.addf %21, %15 : vector<256x128xf32>
    %c0_14 = arith.constant 0 : index
    %c0_15 = arith.constant 0 : index
    %23 = vector.load %arg7[%c0_14, %c0_15] : memref<256x128xf32, #tpu.memory_space<vmem>>, vector<256x128xf32>
    tpu.vector_store %arg7[%c0_14, %c0_15], %22 {strides = array<i32>} : memref<256x128xf32, #tpu.memory_space<vmem>>, vector<256x128xf32>,
    %c0_16 = arith.constant 0 : index
    %c0_17 = arith.constant 0 : index
    %24 = vector.load %arg8[%c0_16, %c0_17] : memref<256x128xf32, #tpu.memory_space<vmem>>, vector<256x128xf32>
    tpu.vector_store %arg8[%c0_16, %c0_17], %15 {strides = array<i32>} : memref<256x128xf32, #tpu.memory_space<vmem>>, vector<256x128xf32>,
    %c0_18 = arith.constant 0 : index
    %c0_19 = arith.constant 0 : index
    %25 = vector.load %arg9[%c0_18, %c0_19] : memref<256x128xf32, #tpu.memory_space<vmem>>, vector<256x128xf32>
    tpu.vector_store %arg9[%c0_18, %c0_19], %16 {strides = array<i32>} : memref<256x128xf32, #tpu.memory_space<vmem>>, vector<256x128xf32>,
    return
  }
  func.func @transform_0(%arg0: i32) -> (i32, i32) {
    %c0_i32 = arith.constant 0 : i32
    %c0_i32_0 = arith.constant 0 : i32
    return %arg0, %c0_i32 : i32, i32
  }
  func.func @transform_1(%arg0: i32) -> (i32, i32) {
    %c0_i32 = arith.constant 0 : i32
    %c0_i32_0 = arith.constant 0 : i32
    return %arg0, %c0_i32 : i32, i32
  }
  func.func @transform_2(%arg0: i32) -> (i32, i32) {
    %c0_i32 = arith.constant 0 : i32
    %c0_i32_0 = arith.constant 0 : i32
    %c0_i32_1 = arith.constant 0 : i32
    return %c0_i32, %c0_i32_0 : i32, i32
  }
  func.func @transform_3(%arg0: i32) -> (i32, i32) {
    %c0_i32 = arith.constant 0 : i32
    %c0_i32_0 = arith.constant 0 : i32
    %c0_i32_1 = arith.constant 0 : i32
    return %c0_i32, %c0_i32_0 : i32, i32
  }
  func.func @transform_4(%arg0: i32) -> (i32, i32) {
    %c0_i32 = arith.constant 0 : i32
    %c0_i32_0 = arith.constant 0 : i32
    %c0_i32_1 = arith.constant 0 : i32
    return %c0_i32, %c0_i32_0 : i32, i32
  }
  func.func @transform_5(%arg0: i32) -> (i32, i32) {
    %c0_i32 = arith.constant 0 : i32
    %c0_i32_0 = arith.constant 0 : i32
    %c0_i32_1 = arith.constant 0 : i32
    return %c0_i32, %c0_i32_0 : i32, i32
  }
  func.func @transform_6(%arg0: i32) -> (i32, i32) {
    %c0_i32 = arith.constant 0 : i32
    %c0_i32_0 = arith.constant 0 : i32
    return %arg0, %c0_i32 : i32, i32
  }
  func.func @transform_7(%arg0: i32) -> (i32, i32) {
    %c0_i32 = arith.constant 0 : i32
    %c0_i32_0 = arith.constant 0 : i32
    return %arg0, %c0_i32 : i32, i32
  }
  func.func @transform_8(%arg0: i32) -> (i32, i32) {
    %c0_i32 = arith.constant 0 : i32
    %c0_i32_0 = arith.constant 0 : i32
    return %arg0, %c0_i32 : i32, i32
  }
}

</mosaic_0001>

<llo_original>
// kernel: tpu_custom_call.1
$region0: #{tpu_custom_call.1}
  #allocation0 [shape = 'u32[]', space=smem, size = 0x4, offset = 0x4, fixed_abs, tag = 'smem constant byte address 0x4 - core index']
  #allocation1 [shape = 'u32[144,128]{1,0:T(1,128)}', space=vmem, size = 0x12000, scoped, tag = 'internal scratch']
  %s0 = inlined_call_operand.vmem [shape: f32[512,64], index: 0, kind: input, shape index: {}]
  %s1 = inlined_call_operand.vmem [shape: f32[512,128], index: 1, kind: input, shape index: {}]
  %s2 = inlined_call_operand.vmem [shape: bf16[64,32], index: 2, kind: input, shape index: {}]
  %s3 = inlined_call_operand.vmem [shape: f32[1,32], index: 3, kind: input, shape index: {}]
  %s4 = inlined_call_operand.vmem [shape: bf16[32,256], index: 4, kind: input, shape index: {}]
  %s5 = inlined_call_operand.vmem [shape: f32[1,256], index: 5, kind: input, shape index: {}]
  %s6 = inlined_call_operand.hbm [shape: f32[512,128], index: 6, kind: output, shape index: {0}]
  %s7 = inlined_call_operand.hbm [shape: f32[512,128], index: 7, kind: output, shape index: {1}]
  %s8 = inlined_call_operand.hbm [shape: f32[512,128], index: 8, kind: output, shape index: {2}]
  %9 = xla_tuple %s6, %s7, %s8
  %s10 = sld [smem:[#allocation0]]
  $region73: #{tpu_custom_call.1} parent=0
    _
  %s12 = ssub.s32 1, %s10
  %s13 = scalar_select 0, %s12, %s10
  $region1: #{tpu_custom_call.1} parent=0
    #allocation2 [shape = 'u8[262144]{0}', space=vmem, size = 0x40000, scoped, tag = 'output window, operand 0']
    #allocation3 [shape = 's32[2]{0}', space=sflag, size = 0x8, scoped, tag = 'scoped memory for tpu_custom_call.1']
    #allocation4 [shape = 'u8[262144]{0}', space=vmem, size = 0x40000, scoped, tag = 'output window, operand 1']
    #allocation5 [shape = 's32[2]{0}', space=sflag, size = 0x8, scoped, tag = 'scoped memory for tpu_custom_call.1']
    #allocation6 [shape = 'u8[262144]{0}', space=vmem, size = 0x40000, scoped, tag = 'output window, operand 2']
    %14 = vsyncpa [#allocation3], 0
    %s15 = scalar_lea.sflag [#allocation3], 1
    %16 = vsyncpa %s15, 0
    %17 = vsyncpa [#allocation5], 0
    %s18 = scalar_lea.sflag [#allocation5], 1
    %19 = vsyncpa %s18, 0
    loop: start=0, step=1, limit=4
    $region2: #{tpu_custom_call.1} parent=1 // loop_pre_header
      _
    $region3: #{tpu_custom_call.1} parent=1 // loop_header
      %s21 = sphi 0, %s25
      %p22 = scmp.ge.s32.totalorder %s21, 4
      %s31 = sphi 0, %s33
      %s34 = sphi 0, %s31
      %s35 = sphi 0, %s34
      %s51 = sphi 0, %s35
      %s57 = sphi 0, %s59
      %s60 = sphi 0, %s57
      %s61 = sphi 0, %s60
      %s77 = sphi 0, %s61
      %s81 = sphi 0, %s81
      %s83 = sphi 0, %s81
      %s84 = sphi 0, %s83
      %s98 = sphi 0, %s84
      %s102 = sphi 0, %s102
      %s104 = sphi 0, %s102
      %s105 = sphi 0, %s104
      %s119 = sphi 0, %s105
      %s123 = sphi 0, %s123
      %s125 = sphi 0, %s123
      %s126 = sphi 0, %s125
      %s140 = sphi 0, %s126
      %s144 = sphi 0, %s144
      %s146 = sphi 0, %s144
      %s147 = sphi 0, %s146
      %s161 = sphi 0, %s147
      %s167 = sphi 0, %s169
      %s170 = sphi 0, %s167
      %s171 = sphi 0, %s170
      %s187 = sphi 0, %s171
      %s193 = sphi 0, %s195
      %s196 = sphi 0, %s193
      %s197 = sphi 0, %s196
      %s213 = sphi 0, %s197
      %s219 = sphi 0, %s221
      %s222 = sphi 0, %s219
      %s223 = sphi 0, %s222
      %s239 = sphi 0, %s223
    $region4: #{tpu_custom_call.1} parent=1 // loop_header_branch
      %24 = sbr.rel (%p22) target = $region8
    $region5: #{tpu_custom_call.1} parent=1 // loop_body
      %s26 = ssub.s32 %s21, 1
      %s27 = ssub.s32 %s21, 2
      %s28 = sadd.s32 %s21, 1
      %s29 = ssub.s32 %s21, %s28
      %p30 = scmp.eq.s32.totalorder %s29, 0
      %s32 = sadd.s32 %s31, 1
      %s33 = scalar_select %p30, %s31, %s32
      %p36 = pneg %p30
      %p37 = scmp.eq.s32.totalorder %s21, 1
      %p38 = por %p36, %p37
      %p39 = scmp.ne.s32.totalorder %s31, %s34
      %p40 = scmp.eq.s32.totalorder %s21, 0
      %p41 = por %p39, %p40
      %p42 = scmp.ne.s32.totalorder %s31, %s34
      %p43 = scmp.eq.s32.totalorder %s26, 1
      %p44 = por %p42, %p43
      %p45 = scmp.ne.s32.totalorder %s34, %s35
      %p46 = scmp.eq.s32.totalorder %s26, 0
      %p47 = por %p45, %p46
      %p48 = scmp.ne.s32.totalorder %s34, %s35
      %p49 = scmp.eq.s32.totalorder %s27, 1
      %p50 = por %p48, %p49
      %p52 = scmp.ne.s32.totalorder %s35, %s51
      %p53 = scmp.eq.s32.totalorder %s27, 0
      %p54 = por %p52, %p53
      %s55 = ssub.s32 %s21, %s28
      %p56 = scmp.eq.s32.totalorder %s55, 0
      %s58 = sadd.s32 %s57, 1
      %s59 = scalar_select %p56, %s57, %s58
      %p62 = pneg %p56
      %p63 = scmp.eq.s32.totalorder %s21, 1
      %p64 = por %p62, %p63
      %p65 = scmp.ne.s32.totalorder %s57, %s60
      %p66 = scmp.eq.s32.totalorder %s21, 0
      %p67 = por %p65, %p66
      %p68 = scmp.ne.s32.totalorder %s57, %s60
      %p69 = scmp.eq.s32.totalorder %s26, 1
      %p70 = por %p68, %p69
      %p71 = scmp.ne.s32.totalorder %s60, %s61
      %p72 = scmp.eq.s32.totalorder %s26, 0
      %p73 = por %p71, %p72
      %p74 = scmp.ne.s32.totalorder %s60, %s61
      %p75 = scmp.eq.s32.totalorder %s27, 1
      %p76 = por %p74, %p75
      %p78 = scmp.ne.s32.totalorder %s61, %s77
      %p79 = scmp.eq.s32.totalorder %s27, 0
      %p80 = por %p78, %p79
      %s82 = sadd.s32 %s81, 1
      %p85 = scmp.eq.s32.totalorder %s21, 1
      %p86 = scmp.ne.s32.totalorder %s81, %s83
      %p87 = scmp.eq.s32.totalorder %s21, 0
      %p88 = por %p86, %p87
      %p89 = scmp.ne.s32.totalorder %s81, %s83
      %p90 = scmp.eq.s32.totalorder %s26, 1
      %p91 = por %p89, %p90
      %p92 = scmp.ne.s32.totalorder %s83, %s84
      %p93 = scmp.eq.s32.totalorder %s26, 0
      %p94 = por %p92, %p93
      %p95 = scmp.ne.s32.totalorder %s83, %s84
      %p96 = scmp.eq.s32.totalorder %s27, 1
      %p97 = por %p95, %p96
      %p99 = scmp.ne.s32.totalorder %s84, %s98
      %p100 = scmp.eq.s32.totalorder %s27, 0
      %p101 = por %p99, %p100
      %s103 = sadd.s32 %s102, 1
      %p106 = scmp.eq.s32.totalorder %s21, 1
      %p107 = scmp.ne.s32.totalorder %s102, %s104
      %p108 = scmp.eq.s32.totalorder %s21, 0
      %p109 = por %p107, %p108
      %p110 = scmp.ne.s32.totalorder %s102, %s104
      %p111 = scmp.eq.s32.totalorder %s26, 1
      %p112 = por %p110, %p111
      %p113 = scmp.ne.s32.totalorder %s104, %s105
      %p114 = scmp.eq.s32.totalorder %s26, 0
      %p115 = por %p113, %p114
      %p116 = scmp.ne.s32.totalorder %s104, %s105
      %p117 = scmp.eq.s32.totalorder %s27, 1
      %p118 = por %p116, %p117
      %p120 = scmp.ne.s32.totalorder %s105, %s119
      %p121 = scmp.eq.s32.totalorder %s27, 0
      %p122 = por %p120, %p121
      %s124 = sadd.s32 %s123, 1
      %p127 = scmp.eq.s32.totalorder %s21, 1
      %p128 = scmp.ne.s32.totalorder %s123, %s125
      %p129 = scmp.eq.s32.totalorder %s21, 0
      %p130 = por %p128, %p129
      %p131 = scmp.ne.s32.totalorder %s123, %s125
      %p132 = scmp.eq.s32.totalorder %s26, 1
      %p133 = por %p131, %p132
      %p134 = scmp.ne.s32.totalorder %s125, %s126
      %p135 = scmp.eq.s32.totalorder %s26, 0
      %p136 = por %p134, %p135
      %p137 = scmp.ne.s32.totalorder %s125, %s126
      %p138 = scmp.eq.s32.totalorder %s27, 1
      %p139 = por %p137, %p138
      %p141 = scmp.ne.s32.totalorder %s126, %s140
      %p142 = scmp.eq.s32.totalorder %s27, 0
      %p143 = por %p141, %p142
      %s145 = sadd.s32 %s144, 1
      %p148 = scmp.eq.s32.totalorder %s21, 1
      %p149 = scmp.ne.s32.totalorder %s144, %s146
      %p150 = scmp.eq.s32.totalorder %s21, 0
      %p151 = por %p149, %p150
      %p152 = scmp.ne.s32.totalorder %s144, %s146
      %p153 = scmp.eq.s32.totalorder %s26, 1
      %p154 = por %p152, %p153
      %p155 = scmp.ne.s32.totalorder %s146, %s147
      %p156 = scmp.eq.s32.totalorder %s26, 0
      %p157 = por %p155, %p156
      %p158 = scmp.ne.s32.totalorder %s146, %s147
      %p159 = scmp.eq.s32.totalorder %s27, 1
      %p160 = por %p158, %p159
      %p162 = scmp.ne.s32.totalorder %s147, %s161
      %p163 = scmp.eq.s32.totalorder %s27, 0
      %p164 = por %p162, %p163
      %s165 = ssub.s32 %s21, %s28
      %p166 = scmp.eq.s32.totalorder %s165, 0
      %s168 = sadd.s32 %s167, 1
      %s169 = scalar_select %p166, %s167, %s168
      %p172 = pneg %p166
      %p173 = scmp.eq.s32.totalorder %s21, 1
      %p174 = por %p172, %p173
      %p175 = scmp.ne.s32.totalorder %s167, %s170
      %p176 = scmp.eq.s32.totalorder %s21, 0
      %p177 = por %p175, %p176
      %p178 = scmp.ne.s32.totalorder %s167, %s170
      %p179 = scmp.eq.s32.totalorder %s26, 1
      %p180 = por %p178, %p179
      %p181 = scmp.ne.s32.totalorder %s170, %s171
      %p182 = scmp.eq.s32.totalorder %s26, 0
      %p183 = por %p181, %p182
      %p184 = scmp.ne.s32.totalorder %s170, %s171
      %p185 = scmp.eq.s32.totalorder %s27, 1
      %p186 = por %p184, %p185
      %p188 = scmp.ne.s32.totalorder %s171, %s187
      %p189 = scmp.eq.s32.totalorder %s27, 0
      %p190 = por %p188, %p189
      %s191 = ssub.s32 %s21, %s28
      %p192 = scmp.eq.s32.totalorder %s191, 0
      %s194 = sadd.s32 %s193, 1
      %s195 = scalar_select %p192, %s193, %s194
      %p198 = pneg %p192
      %p199 = scmp.eq.s32.totalorder %s21, 1
      %p200 = por %p198, %p199
      %p201 = scmp.ne.s32.totalorder %s193, %s196
      %p202 = scmp.eq.s32.totalorder %s21, 0
      %p203 = por %p201, %p202
      %p204 = scmp.ne.s32.totalorder %s193, %s196
      %p205 = scmp.eq.s32.totalorder %s26, 1
      %p206 = por %p204, %p205
      %p207 = scmp.ne.s32.totalorder %s196, %s197
      %p208 = scmp.eq.s32.totalorder %s26, 0
      %p209 = por %p207, %p208
      %p210 = scmp.ne.s32.totalorder %s196, %s197
      %p211 = scmp.eq.s32.totalorder %s27, 1
      %p212 = por %p210, %p211
      %p214 = scmp.ne.s32.totalorder %s197, %s213
      %p215 = scmp.eq.s32.totalorder %s27, 0
      %p216 = por %p214, %p215
      %s217 = ssub.s32 %s21, %s28
      %p218 = scmp.eq.s32.totalorder %s217, 0
      %s220 = sadd.s32 %s219, 1
      %s221 = scalar_select %p218, %s219, %s220
      %p224 = pneg %p218
      %p225 = scmp.eq.s32.totalorder %s21, 1
      %p226 = por %p224, %p225
      %p227 = scmp.ne.s32.totalorder %s219, %s222
      %p228 = scmp.eq.s32.totalorder %s21, 0
      %p229 = por %p227, %p228
      %p230 = scmp.ne.s32.totalorder %s219, %s222
      %p231 = scmp.eq.s32.totalorder %s26, 1
      %p232 = por %p230, %p231
      %p233 = scmp.ne.s32.totalorder %s222, %s223
      %p234 = scmp.eq.s32.totalorder %s26, 0
      %p235 = por %p233, %p234
      %p236 = scmp.ne.s32.totalorder %s222, %s223
      %p237 = scmp.eq.s32.totalorder %s27, 1
      %p238 = por %p236, %p237
      %p240 = scmp.ne.s32.totalorder %s223, %s239
      %p241 = scmp.eq.s32.totalorder %s27, 0
      %p242 = por %p240, %p241
      %p243 = scmp.le.s32.totalorder 1, %s21
      %p244 = scmp.lt.s32.totalorder %s21, 3
      %p245 = pnand %p243, %p244
      %p246 = pneg %p245
      // Predicated region
      $region9: #{tpu_custom_call.1} parent=5 // pred_check
        _
      $region10: #{tpu_custom_call.1} parent=5 // pred_check_branch
        %248 = sbr.rel (%p245) target = $region12
      $region11: #{tpu_custom_call.1} parent=5 // pred_region
        %s249 = ssub.s32 %s21, 1
        // Predicated region
        $region13: #{tpu_custom_call.1} parent=11 // pred_check
          %p250 = pneg %p94
        $region14: #{tpu_custom_call.1} parent=11 // pred_check_branch
          %252 = sbr.rel (%p250) target = $region16
        $region15: #{tpu_custom_call.1} parent=11 // pred_region
          _
        $region16: #{tpu_custom_call.1} parent=11 // pred_fallthru
          _
        // Predicated region
        $region17: #{tpu_custom_call.1} parent=11 // pred_check
          %p253 = pneg %p115
        $region18: #{tpu_custom_call.1} parent=11 // pred_check_branch
          %255 = sbr.rel (%p253) target = $region20
        $region19: #{tpu_custom_call.1} parent=11 // pred_region
          _
        $region20: #{tpu_custom_call.1} parent=11 // pred_fallthru
          _
        // Predicated region
        $region21: #{tpu_custom_call.1} parent=11 // pred_check
          %p256 = pneg %p136
        $region22: #{tpu_custom_call.1} parent=11 // pred_check_branch
          %258 = sbr.rel (%p256) target = $region24
        $region23: #{tpu_custom_call.1} parent=11 // pred_region
          _
        $region24: #{tpu_custom_call.1} parent=11 // pred_fallthru
          _
        // Predicated region
        $region25: #{tpu_custom_call.1} parent=11 // pred_check
          %p259 = pneg %p157
        $region26: #{tpu_custom_call.1} parent=11 // pred_check_branch
          %261 = sbr.rel (%p259) target = $region28
        $region27: #{tpu_custom_call.1} parent=11 // pred_region
          _
        $region28: #{tpu_custom_call.1} parent=11 // pred_fallthru
          _
      $region12: #{tpu_custom_call.1} parent=5 // pred_fallthru
        _
      %p262 = scmp.lt.s32.totalorder %s21, 2
      // Predicated region
      $region29: #{tpu_custom_call.1} parent=5 // pred_check
        %p263 = pneg %p262
      $region30: #{tpu_custom_call.1} parent=5 // pred_check_branch
        %265 = sbr.rel (%p263) target = $region32
      $region31: #{tpu_custom_call.1} parent=5 // pred_region
        // Predicated region
        $region33: #{tpu_custom_call.1} parent=31 // pred_check
          %p266 = pneg %p41
        $region34: #{tpu_custom_call.1} parent=31 // pred_check_branch
          %268 = sbr.rel (%p266) target = $region36
        $region35: #{tpu_custom_call.1} parent=31 // pred_region
          %s269 = smul.u32 32, %s21
          %p270 = scmp.lt.s32.totalorder %s269, 63
          %s271 = scalar_select %p270, %s269, 63
          %s272 = smul.addr %s271, 8
          %s273 = scalar_lea.vmem %s0, %s272
          %s274 = smul.u32 32, %s21
        $region36: #{tpu_custom_call.1} parent=31 // pred_fallthru
          _
        // Predicated region
        $region37: #{tpu_custom_call.1} parent=31 // pred_check
          %p275 = pneg %p67
        $region38: #{tpu_custom_call.1} parent=31 // pred_check_branch
          %277 = sbr.rel (%p275) target = $region40
        $region39: #{tpu_custom_call.1} parent=31 // pred_region
          %s278 = smul.u32 32, %s21
          %p279 = scmp.lt.s32.totalorder %s278, 63
          %s280 = scalar_select %p279, %s278, 63
          %s281 = smul.addr %s280, 8
          %s282 = scalar_lea.vmem %s1, %s281
          %s283 = smul.u32 32, %s21
        $region40: #{tpu_custom_call.1} parent=31 // pred_fallthru
          _
      $region32: #{tpu_custom_call.1} parent=5 // pred_fallthru
        _
      %p284 = scmp.le.s32.totalorder 1, %s21
      %p285 = scmp.lt.s32.totalorder %s21, 3
      %p286 = pnand %p284, %p285
      %p287 = pneg %p286
      // Predicated region
      $region41: #{tpu_custom_call.1} parent=5 // pred_check
        _
      $region42: #{tpu_custom_call.1} parent=5 // pred_check_branch
        %289 = sbr.rel (%p286) target = $region44
      $region43: #{tpu_custom_call.1} parent=5 // pred_region
        %s290 = ssub.s32 %s21, 1
        %s291 = smul.u32 32, %s26
        %p292 = scmp.lt.s32.totalorder %s291, 63
        %s293 = scalar_select %p292, %s291, 63
        %s294 = smul.addr %s293, 8
        %s295 = scalar_lea.vmem %s0, %s294
        %p296 = pneg %p47
        %p297 = pneg %p44
        %s298 = smul.u32 32, %s26
        %p299 = scmp.lt.s32.totalorder %s298, 63
        %s300 = scalar_select %p299, %s298, 63
        %s301 = smul.addr %s300, 8
        %s302 = scalar_lea.vmem %s1, %s301
        %p303 = pneg %p73
        %p304 = pneg %p70
        %p305 = pneg %p94
        %p306 = pneg %p91
        %p307 = pneg %p115
        %p308 = pneg %p112
        %p309 = pneg %p136
        %p310 = pneg %p133
        %p311 = pneg %p157
        %p312 = pneg %p154
        %p313 = pneg %p183
        %p314 = pneg %p180
        %s315 = sand.u32 %s170, 1
        %s316 = scalar_lea.sflag [#allocation3], %s315
        %s317 = sand.u32 %s170, 1
        %s318 = smul.addr %s317, 256
        %s319 = scalar_lea.vmem [#allocation2], %s318
        %p320 = pneg %p209
        %p321 = pneg %p206
        %s322 = sand.u32 %s26, 1
        %s323 = scalar_lea.sflag [#allocation5], %s322
        %s324 = sand.u32 %s196, 1
        %s325 = smul.addr %s324, 256
        %s326 = scalar_lea.vmem [#allocation4], %s325
        %p327 = pneg %p235
        %p328 = pneg %p232
        %s329 = sand.u32 %s26, 1
        %s330 = scalar_lea.sflag [#allocation5], %s329
        %s331 = sand.u32 %s222, 1
        %s332 = smul.addr %s331, 256
        %s333 = scalar_lea.vmem [#allocation6], %s332
        %s334 = smul.u32 32, %s26
        %p335 = scmp.lt.s32.totalorder %s334, 63
        %s336 = scalar_select %p335, %s334, 63
        %s337 = smul.addr %s336, 8
        %s338 = scalar_lea.vmem %s0, %s337
        %s339 = smul.u32 32, %s26
        %s340 = smul.u32 32, %s26
        %p341 = scmp.lt.s32.totalorder %s340, 63
        %s342 = scalar_select %p341, %s340, 63
        %s343 = smul.addr %s342, 8
        %s344 = scalar_lea.vmem %s1, %s343
        %s345 = smul.u32 32, %s26
        %s346 = smul.u32 32, %s26
        %s347 = smul.u32 32, %s26
        %s348 = smul.u32 32, %s26
        %v350 = vld [vmem:[%s338] sm:$0xff]
        %v351 = vld [vmem:[%s338 + $0x8] sm:$0xff]
        %v352 = vld [vmem:[%s338 + $0x10] sm:$0xff]
        %v353 = vld [vmem:[%s338 + $0x18] sm:$0xff]
        %v354 = vld [vmem:[%s338 + $0x20] sm:$0xff]
        %v355 = vld [vmem:[%s338 + $0x28] sm:$0xff]
        %v356 = vld [vmem:[%s338 + $0x30] sm:$0xff]
        %v357 = vld [vmem:[%s338 + $0x38] sm:$0xff]
        %v358 = vld [vmem:[%s338 + $0x40] sm:$0xff]
        %v359 = vld [vmem:[%s338 + $0x48] sm:$0xff]
        %v360 = vld [vmem:[%s338 + $0x50] sm:$0xff]
        %v361 = vld [vmem:[%s338 + $0x58] sm:$0xff]
        %v362 = vld [vmem:[%s338 + $0x60] sm:$0xff]
        %v363 = vld [vmem:[%s338 + $0x68] sm:$0xff]
        %v364 = vld [vmem:[%s338 + $0x70] sm:$0xff]
        %v365 = vld [vmem:[%s338 + $0x78] sm:$0xff]
        %v366 = vld [vmem:[%s338 + $0x80] sm:$0xff]
        %v367 = vld [vmem:[%s338 + $0x88] sm:$0xff]
        %v368 = vld [vmem:[%s338 + $0x90] sm:$0xff]
        %v369 = vld [vmem:[%s338 + $0x98] sm:$0xff]
        %v370 = vld [vmem:[%s338 + $0xa0] sm:$0xff]
        %v371 = vld [vmem:[%s338 + $0xa8] sm:$0xff]
        %v372 = vld [vmem:[%s338 + $0xb0] sm:$0xff]
        %v373 = vld [vmem:[%s338 + $0xb8] sm:$0xff]
        %v374 = vld [vmem:[%s338 + $0xc0] sm:$0xff]
        %v375 = vld [vmem:[%s338 + $0xc8] sm:$0xff]
        %v376 = vld [vmem:[%s338 + $0xd0] sm:$0xff]
        %v377 = vld [vmem:[%s338 + $0xd8] sm:$0xff]
        %v378 = vld [vmem:[%s338 + $0xe0] sm:$0xff]
        %v379 = vld [vmem:[%s338 + $0xe8] sm:$0xff]
        %v380 = vld [vmem:[%s338 + $0xf0] sm:$0xff]
        %v381 = vld [vmem:[%s338 + $0xf8] sm:$0xff]
        %v382 = vpack.c.bf16 %v351, %v350
        %v383 = vpack.c.bf16 %v353, %v352
        %v384 = vpack.c.bf16 %v355, %v354
        %v385 = vpack.c.bf16 %v357, %v356
        %v386 = vpack.c.bf16 %v359, %v358
        %v387 = vpack.c.bf16 %v361, %v360
        %v388 = vpack.c.bf16 %v363, %v362
        %v389 = vpack.c.bf16 %v365, %v364
        %v390 = vpack.c.bf16 %v367, %v366
        %v391 = vpack.c.bf16 %v369, %v368
        %v392 = vpack.c.bf16 %v371, %v370
        %v393 = vpack.c.bf16 %v373, %v372
        %v394 = vpack.c.bf16 %v375, %v374
        %v395 = vpack.c.bf16 %v377, %v376
        %v396 = vpack.c.bf16 %v379, %v378
        %v397 = vpack.c.bf16 %v381, %v380
        %v398 = vld [vmem:[%s2] sm:$0xf]
        %v399 = vld [vmem:[%s2 + $0x4] sm:$0xf]
        %v400 = vld [vmem:[%s2 + $0x8] sm:$0xf]
        %v401 = vld [vmem:[%s2 + $0xc] sm:$0xf]
        %v402 = vld [vmem:[%s2 + $0x10] sm:$0xf]
        %v403 = vld [vmem:[%s2 + $0x14] sm:$0xf]
        %v404 = vld [vmem:[%s2 + $0x18] sm:$0xf]
        %v405 = vld [vmem:[%s2 + $0x1c] sm:$0xf]
        %v406 = vld [vmem:[%s3] sm:$0x1]
        %v408 = vlaneseq
        %v409 = vshrl.u32 %v408, 7
        %v410 = vsub.s32 0, %v409
        %v411 = vrot.slane %v406, %v410
        %v421 = vunpack.c.l.b16 %v398
        %v422 = vunpack.c.l.b16 %v399
        %v423 = vunpack.c.l.b16 %v400
        %v424 = vunpack.c.l.b16 %v401
        %v425 = vunpack.c.l.b16 %v402
        %v426 = vunpack.c.l.b16 %v403
        %v427 = vunpack.c.l.b16 %v404
        %v428 = vunpack.c.l.b16 %v405
        %v429 = vpack.c.b16 %v422, %v421
        %v430 = vpack.c.b16 %v424, %v423
        %v431 = vpack.c.b16 %v426, %v425
        %v432 = vpack.c.b16 %v428, %v427
        %vm437 = vcmask 523264
        %v439 = vsel %vm437, %v382, 0
        %v442 = vsel %vm437, %v383, 0
        %v445 = vsel %vm437, %v384, 0
        %v448 = vsel %vm437, %v385, 0
        %v451 = vsel %vm437, %v386, 0
        %v454 = vsel %vm437, %v387, 0
        %v457 = vsel %vm437, %v388, 0
        %v460 = vsel %vm437, %v389, 0
        %v463 = vsel %vm437, %v390, 0
        %v466 = vsel %vm437, %v391, 0
        %v469 = vsel %vm437, %v392, 0
        %v472 = vsel %vm437, %v393, 0
        %v475 = vsel %vm437, %v394, 0
        %v478 = vsel %vm437, %v395, 0
        %v481 = vsel %vm437, %v396, 0
        %v484 = vsel %vm437, %v397, 0
        %486 = vmatprep.subr.bf16.mxu0 0
        %487 = vmatpush1.bf16.msra.mxu0 %v429
        %488 = vmatprep.subr.bf16.mxu0 0
        %489 = vmatpush1.bf16.msra.mxu0 %v430
        %490 = vmatprep.subr.bf16.mxu0 0
        %491 = vmatpush1.bf16.msra.mxu0 %v431
        %492 = vmatprep.subr.bf16.mxu0 0
        %493 = vmatpush1.bf16.msra.mxu0 %v432
        %494 = vmatprep.subr.bf16.mxu0 0
        %495 = vmatpush1.bf16.msra.mxu0 0
        %496 = vmatprep.subr.bf16.mxu0 0
        %497 = vmatpush1.bf16.msra.mxu0 0
        %498 = vmatprep.subr.bf16.mxu0 0
        %499 = vmatpush1.bf16.msra.mxu0 0
        %500 = vmatprep.subr.bf16.mxu0 0
        %501 = vmatpush1.bf16.msra.mxu0 0
        %502 = vmatprep.subr.bf16.mxu0 0
        %503 = vmatpush1.bf16.msra.mxu0 0
        %504 = vmatprep.subr.bf16.mxu0 0
        %505 = vmatpush1.bf16.msra.mxu0 0
        %506 = vmatprep.subr.bf16.mxu0 0
        %507 = vmatpush1.bf16.msra.mxu0 0
        %508 = vmatprep.subr.bf16.mxu0 0
        %509 = vmatpush1.bf16.msra.mxu0 0
        %510 = vmatprep.subr.bf16.mxu0 0
        %511 = vmatpush1.bf16.msra.mxu0 0
        %512 = vmatprep.subr.bf16.mxu0 0
        %513 = vmatpush1.bf16.msra.mxu0 0
        %514 = vmatprep.subr.bf16.mxu0 0
        %515 = vmatpush1.bf16.msra.mxu0 0
        %516 = vmatprep.subr.bf16.mxu0 0
        %517 = vmatpush1.bf16.msra.mxu0 0
        %518 = vmatprep.mubr.bf16.mxu0 0
        %519 = vmatmul.mubr.bf16.gmra.mrb[0].mxu0 %v439
        %v520 = vpop.f32.mrb[0].mxu0
        %v521 = vadd.f32 %v411, %v520
        %v522 = vpop.f32.mrb[0].mxu0
        %v523 = vpop.f32.mrb[0].mxu0
        %v524 = vadd.f32 %v411, %v523
        %v525 = vpop.f32.mrb[0].mxu0
        %526 = vmatprep.mubr.bf16.mxu0 0
        %527 = vmatmul.mubr.bf16.gmra.mrb[0].mxu0 %v442
        %v528 = vpop.f32.mrb[0].mxu0
        %v529 = vadd.f32 %v411, %v528
        %v530 = vpop.f32.mrb[0].mxu0
        %v531 = vpop.f32.mrb[0].mxu0
        %v532 = vadd.f32 %v411, %v531
        %v533 = vpop.f32.mrb[0].mxu0
        %534 = vmatprep.mubr.bf16.mxu0 0
        %535 = vmatmul.mubr.bf16.gmra.mrb[0].mxu0 %v445
        %v536 = vpop.f32.mrb[0].mxu0
        %v537 = vadd.f32 %v411, %v536
        %v538 = vpop.f32.mrb[0].mxu0
        %v539 = vpop.f32.mrb[0].mxu0
        %v540 = vadd.f32 %v411, %v539
        %v541 = vpop.f32.mrb[0].mxu0
        %542 = vmatprep.mubr.bf16.mxu0 0
        %543 = vmatmul.mubr.bf16.gmra.mrb[0].mxu0 %v448
        %v544 = vpop.f32.mrb[0].mxu0
        %v545 = vadd.f32 %v411, %v544
        %v546 = vpop.f32.mrb[0].mxu0
        %v547 = vpop.f32.mrb[0].mxu0
        %v548 = vadd.f32 %v411, %v547
        %v549 = vpop.f32.mrb[0].mxu0
        %550 = vmatprep.mubr.bf16.mxu0 0
        %551 = vmatmul.mubr.bf16.gmra.mrb[0].mxu0 %v451
        %v552 = vpop.f32.mrb[0].mxu0
        %v553 = vadd.f32 %v411, %v552
        %v554 = vpop.f32.mrb[0].mxu0
        %v555 = vpop.f32.mrb[0].mxu0
        %v556 = vadd.f32 %v411, %v555
        %v557 = vpop.f32.mrb[0].mxu0
        %558 = vmatprep.mubr.bf16.mxu0 0
        %559 = vmatmul.mubr.bf16.gmra.mrb[0].mxu0 %v454
        %v560 = vpop.f32.mrb[0].mxu0
        %v561 = vadd.f32 %v411, %v560
        %v562 = vpop.f32.mrb[0].mxu0
        %v563 = vpop.f32.mrb[0].mxu0
        %v564 = vadd.f32 %v411, %v563
        %v565 = vpop.f32.mrb[0].mxu0
        %566 = vmatprep.mubr.bf16.mxu0 0
        %567 = vmatmul.mubr.bf16.gmra.mrb[0].mxu0 %v457
        %v568 = vpop.f32.mrb[0].mxu0
        %v569 = vadd.f32 %v411, %v568
        %v570 = vpop.f32.mrb[0].mxu0
        %v571 = vpop.f32.mrb[0].mxu0
        %v572 = vadd.f32 %v411, %v571
        %v573 = vpop.f32.mrb[0].mxu0
        %574 = vmatprep.mubr.bf16.mxu0 0
        %575 = vmatmul.mubr.bf16.gmra.mrb[0].mxu0 %v460
        %v576 = vpop.f32.mrb[0].mxu0
        %v577 = vadd.f32 %v411, %v576
        %v578 = vpop.f32.mrb[0].mxu0
        %v579 = vpop.f32.mrb[0].mxu0
        %v580 = vadd.f32 %v411, %v579
        %v581 = vpop.f32.mrb[0].mxu0
        %582 = vmatprep.mubr.bf16.mxu0 0
        %583 = vmatmul.mubr.bf16.gmra.mrb[0].mxu0 %v463
        %v584 = vpop.f32.mrb[0].mxu0
        %v585 = vadd.f32 %v411, %v584
        %v586 = vpop.f32.mrb[0].mxu0
        %v587 = vpop.f32.mrb[0].mxu0
        %v588 = vadd.f32 %v411, %v587
        %v589 = vpop.f32.mrb[0].mxu0
        %590 = vmatprep.mubr.bf16.mxu0 0
        %591 = vmatmul.mubr.bf16.gmra.mrb[0].mxu0 %v466
        %v592 = vpop.f32.mrb[0].mxu0
        %v593 = vadd.f32 %v411, %v592
        %v594 = vpop.f32.mrb[0].mxu0
        %v595 = vpop.f32.mrb[0].mxu0
        %v596 = vadd.f32 %v411, %v595
        %v597 = vpop.f32.mrb[0].mxu0
        %598 = vmatprep.mubr.bf16.mxu0 0
        %599 = vmatmul.mubr.bf16.gmra.mrb[0].mxu0 %v469
        %v600 = vpop.f32.mrb[0].mxu0
        %v601 = vadd.f32 %v411, %v600
        %v602 = vpop.f32.mrb[0].mxu0
        %v603 = vpop.f32.mrb[0].mxu0
        %v604 = vadd.f32 %v411, %v603
        %v605 = vpop.f32.mrb[0].mxu0
        %606 = vmatprep.mubr.bf16.mxu0 0
        %607 = vmatmul.mubr.bf16.gmra.mrb[0].mxu0 %v472
        %v608 = vpop.f32.mrb[0].mxu0
        %v609 = vadd.f32 %v411, %v608
        %v610 = vpop.f32.mrb[0].mxu0
        %v611 = vpop.f32.mrb[0].mxu0
        %v612 = vadd.f32 %v411, %v611
        %v613 = vpop.f32.mrb[0].mxu0
        %614 = vmatprep.mubr.bf16.mxu0 0
        %615 = vmatmul.mubr.bf16.gmra.mrb[0].mxu0 %v475
        %v616 = vpop.f32.mrb[0].mxu0
        %v617 = vadd.f32 %v411, %v616
        %v618 = vpop.f32.mrb[0].mxu0
        %v619 = vpop.f32.mrb[0].mxu0
        %v620 = vadd.f32 %v411, %v619
        %v621 = vpop.f32.mrb[0].mxu0
        %622 = vmatprep.mubr.bf16.mxu0 0
        %623 = vmatmul.mubr.bf16.gmra.mrb[0].mxu0 %v478
        %v624 = vpop.f32.mrb[0].mxu0
        %v625 = vadd.f32 %v411, %v624
        %v626 = vpop.f32.mrb[0].mxu0
        %v627 = vpop.f32.mrb[0].mxu0
        %v628 = vadd.f32 %v411, %v627
        %v629 = vpop.f32.mrb[0].mxu0
        %630 = vmatprep.mubr.bf16.mxu0 0
        %631 = vmatmul.mubr.bf16.gmra.mrb[0].mxu0 %v481
        %v632 = vpop.f32.mrb[0].mxu0
        %v633 = vadd.f32 %v411, %v632
        %v634 = vpop.f32.mrb[0].mxu0
        %v635 = vpop.f32.mrb[0].mxu0
        %v636 = vadd.f32 %v411, %v635
        %v637 = vpop.f32.mrb[0].mxu0
        %638 = vmatprep.mubr.bf16.mxu0 0
        %639 = vmatmul.mubr.bf16.gmra.mrb[0].mxu0 %v484
        %v640 = vpop.f32.mrb[0].mxu0
        %v641 = vadd.f32 %v411, %v640
        %v642 = vpop.f32.mrb[0].mxu0
        %v643 = vpop.f32.mrb[0].mxu0
        %v644 = vadd.f32 %v411, %v643
        %v645 = vpop.f32.mrb[0].mxu0
        %646 = vdwg.mxu0
        %v647 = vmax.f32 %v521, 0.0
        %v648 = vmax.f32 %v524, 0.0
        %v649 = vmax.f32 %v529, 0.0
        %v650 = vmax.f32 %v532, 0.0
        %v651 = vmax.f32 %v537, 0.0
        %v652 = vmax.f32 %v540, 0.0
        %v653 = vmax.f32 %v545, 0.0
        %v654 = vmax.f32 %v548, 0.0
        %v655 = vmax.f32 %v553, 0.0
        %v656 = vmax.f32 %v556, 0.0
        %v657 = vmax.f32 %v561, 0.0
        %v658 = vmax.f32 %v564, 0.0
        %v659 = vmax.f32 %v569, 0.0
        %v660 = vmax.f32 %v572, 0.0
        %v661 = vmax.f32 %v577, 0.0
        %v662 = vmax.f32 %v580, 0.0
        %v663 = vmax.f32 %v585, 0.0
        %v664 = vmax.f32 %v588, 0.0
        %v665 = vmax.f32 %v593, 0.0
        %v666 = vmax.f32 %v596, 0.0
        %v667 = vmax.f32 %v601, 0.0
        %v668 = vmax.f32 %v604, 0.0
        %v669 = vmax.f32 %v609, 0.0
        %v670 = vmax.f32 %v612, 0.0
        %v671 = vmax.f32 %v617, 0.0
        %v672 = vmax.f32 %v620, 0.0
        %v673 = vmax.f32 %v625, 0.0
        %v674 = vmax.f32 %v628, 0.0
        %v675 = vmax.f32 %v633, 0.0
        %v676 = vmax.f32 %v636, 0.0
        %v677 = vmax.f32 %v641, 0.0
        %v678 = vmax.f32 %v644, 0.0
        %v679 = vpack.c.bf16 %v648, %v647
        %v680 = vpack.c.bf16 %v650, %v649
        %v681 = vpack.c.bf16 %v652, %v651
        %v682 = vpack.c.bf16 %v654, %v653
        %v683 = vpack.c.bf16 %v656, %v655
        %v684 = vpack.c.bf16 %v658, %v657
        %v685 = vpack.c.bf16 %v660, %v659
        %v686 = vpack.c.bf16 %v662, %v661
        %v687 = vpack.c.bf16 %v664, %v663
        %v688 = vpack.c.bf16 %v666, %v665
        %v689 = vpack.c.bf16 %v668, %v667
        %v690 = vpack.c.bf16 %v670, %v669
        %v691 = vpack.c.bf16 %v672, %v671
        %v692 = vpack.c.bf16 %v674, %v673
        %v693 = vpack.c.bf16 %v676, %v675
        %v694 = vpack.c.bf16 %v678, %v677
        %v695 = vld [vmem:[%s4] sm:$0xff]
        %v696 = vld [vmem:[%s4 + $0x8] sm:$0xff]
        %v697 = vld [vmem:[%s4 + $0x10] sm:$0xff]
        %v698 = vld [vmem:[%s4 + $0x18] sm:$0xff]
        %v699 = vld [vmem:[%s5] sm:$0x3]
        %v701 = vlaneseq
        %v702 = vshrl.u32 %v701, 7
        %v703 = vsub.s32 0, %v702
        %v704 = vrot.slane %v699, %v703
        %v705 = vlaneseq
        %v706 = vshrl.u32 %v705, 7
        %v707 = vsub.s32 1, %v706
        %v708 = vrot.slane %v699, %v707
        %v715 = vunpack.c.l.b16 %v695
        %v716 = vunpack.c.h.b16 %v695
        %v717 = vunpack.c.l.b16 %v696
        %v718 = vunpack.c.h.b16 %v696
        %v719 = vunpack.c.l.b16 %v697
        %v720 = vunpack.c.h.b16 %v697
        %v721 = vunpack.c.l.b16 %v698
        %v722 = vunpack.c.h.b16 %v698
        %v723 = vpack.c.b16 %v717, %v715
        %v724 = vpack.c.b16 %v718, %v716
        %v725 = vpack.c.b16 %v721, %v719
        %v726 = vpack.c.b16 %v722, %v720
        %vm731 = vcmask 261120
        %v733 = vsel %vm731, %v679, 0
        %v736 = vsel %vm731, %v680, 0
        %v739 = vsel %vm731, %v681, 0
        %v742 = vsel %vm731, %v682, 0
        %v745 = vsel %vm731, %v683, 0
        %v748 = vsel %vm731, %v684, 0
        %v751 = vsel %vm731, %v685, 0
        %v754 = vsel %vm731, %v686, 0
        %v757 = vsel %vm731, %v687, 0
        %v760 = vsel %vm731, %v688, 0
        %v763 = vsel %vm731, %v689, 0
        %v766 = vsel %vm731, %v690, 0
        %v769 = vsel %vm731, %v691, 0
        %v772 = vsel %vm731, %v692, 0
        %v775 = vsel %vm731, %v693, 0
        %v778 = vsel %vm731, %v694, 0
        %780 = vmatprep.subr.bf16.mxu0 %v724
        %781 = vmatpush1.bf16.msra.mxu0 %v723
        %782 = vmatprep.subr.bf16.mxu0 %v726
        %783 = vmatpush1.bf16.msra.mxu0 %v725
        %784 = vmatprep.subr.bf16.mxu0 0
        %785 = vmatpush1.bf16.msra.mxu0 0
        %786 = vmatprep.subr.bf16.mxu0 0
        %787 = vmatpush1.bf16.msra.mxu0 0
        %788 = vmatprep.subr.bf16.mxu0 0
        %789 = vmatpush1.bf16.msra.mxu0 0
        %790 = vmatprep.subr.bf16.mxu0 0
        %791 = vmatpush1.bf16.msra.mxu0 0
        %792 = vmatprep.subr.bf16.mxu0 0
        %793 = vmatpush1.bf16.msra.mxu0 0
        %794 = vmatprep.subr.bf16.mxu0 0
        %795 = vmatpush1.bf16.msra.mxu0 0
        %796 = vmatprep.subr.bf16.mxu0 0
        %797 = vmatpush1.bf16.msra.mxu0 0
        %798 = vmatprep.subr.bf16.mxu0 0
        %799 = vmatpush1.bf16.msra.mxu0 0
        %800 = vmatprep.subr.bf16.mxu0 0
        %801 = vmatpush1.bf16.msra.mxu0 0
        %802 = vmatprep.subr.bf16.mxu0 0
        %803 = vmatpush1.bf16.msra.mxu0 0
        %804 = vmatprep.subr.bf16.mxu0 0
        %805 = vmatpush1.bf16.msra.mxu0 0
        %806 = vmatprep.subr.bf16.mxu0 0
        %807 = vmatpush1.bf16.msra.mxu0 0
        %808 = vmatprep.subr.bf16.mxu0 0
        %809 = vmatpush1.bf16.msra.mxu0 0
        %810 = vmatprep.subr.bf16.mxu0 0
        %811 = vmatpush1.bf16.msra.mxu0 0
        %812 = vmatprep.mubr.bf16.mxu0 0
        %813 = vmatmul.mubr.bf16.gmra.mrb[0].mxu0 %v733
        %v814 = vpop.f32.mrb[0].mxu0
        %v815 = vadd.f32 %v704, %v814
        %v816 = vpop.f32.mrb[0].mxu0
        %v817 = vadd.f32 %v708, %v816
        %v818 = vpop.f32.mrb[0].mxu0
        %v819 = vadd.f32 %v704, %v818
        %v820 = vpop.f32.mrb[0].mxu0
        %v821 = vadd.f32 %v708, %v820
        %822 = vmatprep.mubr.bf16.mxu0 0
        %823 = vmatmul.mubr.bf16.gmra.mrb[0].mxu0 %v736
        %v824 = vpop.f32.mrb[0].mxu0
        %v825 = vadd.f32 %v704, %v824
        %v826 = vpop.f32.mrb[0].mxu0
        %v827 = vadd.f32 %v708, %v826
        %v828 = vpop.f32.mrb[0].mxu0
        %v829 = vadd.f32 %v704, %v828
        %v830 = vpop.f32.mrb[0].mxu0
        %v831 = vadd.f32 %v708, %v830
        %832 = vmatprep.mubr.bf16.mxu0 0
        %833 = vmatmul.mubr.bf16.gmra.mrb[0].mxu0 %v739
        %v834 = vpop.f32.mrb[0].mxu0
        %v835 = vadd.f32 %v704, %v834
        %v836 = vpop.f32.mrb[0].mxu0
        %v837 = vadd.f32 %v708, %v836
        %v838 = vpop.f32.mrb[0].mxu0
        %v839 = vadd.f32 %v704, %v838
        %v840 = vpop.f32.mrb[0].mxu0
        %v841 = vadd.f32 %v708, %v840
        %842 = vmatprep.mubr.bf16.mxu0 0
        %843 = vmatmul.mubr.bf16.gmra.mrb[0].mxu0 %v742
        %v844 = vpop.f32.mrb[0].mxu0
        %v845 = vadd.f32 %v704, %v844
        %v846 = vpop.f32.mrb[0].mxu0
        %v847 = vadd.f32 %v708, %v846
        %v848 = vpop.f32.mrb[0].mxu0
        %v849 = vadd.f32 %v704, %v848
        %v850 = vpop.f32.mrb[0].mxu0
        %v851 = vadd.f32 %v708, %v850
        %852 = vmatprep.mubr.bf16.mxu0 0
        %853 = vmatmul.mubr.bf16.gmra.mrb[0].mxu0 %v745
        %v854 = vpop.f32.mrb[0].mxu0
        %v855 = vadd.f32 %v704, %v854
        %v856 = vpop.f32.mrb[0].mxu0
        %v857 = vadd.f32 %v708, %v856
        %v858 = vpop.f32.mrb[0].mxu0
        %v859 = vadd.f32 %v704, %v858
        %v860 = vpop.f32.mrb[0].mxu0
        %v861 = vadd.f32 %v708, %v860
        %862 = vmatprep.mubr.bf16.mxu0 0
        %863 = vmatmul.mubr.bf16.gmra.mrb[0].mxu0 %v748
        %v864 = vpop.f32.mrb[0].mxu0
        %v865 = vadd.f32 %v704, %v864
        %v866 = vpop.f32.mrb[0].mxu0
        %v867 = vadd.f32 %v708, %v866
        %v868 = vpop.f32.mrb[0].mxu0
        %v869 = vadd.f32 %v704, %v868
        %v870 = vpop.f32.mrb[0].mxu0
        %v871 = vadd.f32 %v708, %v870
        %872 = vmatprep.mubr.bf16.mxu0 0
        %873 = vmatmul.mubr.bf16.gmra.mrb[0].mxu0 %v751
        %v874 = vpop.f32.mrb[0].mxu0
        %v875 = vadd.f32 %v704, %v874
        %v876 = vpop.f32.mrb[0].mxu0
        %v877 = vadd.f32 %v708, %v876
        %v878 = vpop.f32.mrb[0].mxu0
        %v879 = vadd.f32 %v704, %v878
        %v880 = vpop.f32.mrb[0].mxu0
        %v881 = vadd.f32 %v708, %v880
        %882 = vmatprep.mubr.bf16.mxu0 0
        %883 = vmatmul.mubr.bf16.gmra.mrb[0].mxu0 %v754
        %v884 = vpop.f32.mrb[0].mxu0
        %v885 = vadd.f32 %v704, %v884
        %v886 = vpop.f32.mrb[0].mxu0
        %v887 = vadd.f32 %v708, %v886
        %v888 = vpop.f32.mrb[0].mxu0
        %v889 = vadd.f32 %v704, %v888
        %v890 = vpop.f32.mrb[0].mxu0
        %v891 = vadd.f32 %v708, %v890
        %892 = vmatprep.mubr.bf16.mxu0 0
        %893 = vmatmul.mubr.bf16.gmra.mrb[0].mxu0 %v757
        %v894 = vpop.f32.mrb[0].mxu0
        %v895 = vadd.f32 %v704, %v894
        %v896 = vpop.f32.mrb[0].mxu0
        %v897 = vadd.f32 %v708, %v896
        %v898 = vpop.f32.mrb[0].mxu0
        %v899 = vadd.f32 %v704, %v898
        %v900 = vpop.f32.mrb[0].mxu0
        %v901 = vadd.f32 %v708, %v900
        %902 = vmatprep.mubr.bf16.mxu0 0
        %903 = vmatmul.mubr.bf16.gmra.mrb[0].mxu0 %v760
        %v904 = vpop.f32.mrb[0].mxu0
        %v905 = vadd.f32 %v704, %v904
        %v906 = vpop.f32.mrb[0].mxu0
        %v907 = vadd.f32 %v708, %v906
        %v908 = vpop.f32.mrb[0].mxu0
        %v909 = vadd.f32 %v704, %v908
        %v910 = vpop.f32.mrb[0].mxu0
        %v911 = vadd.f32 %v708, %v910
        %912 = vmatprep.mubr.bf16.mxu0 0
        %913 = vmatmul.mubr.bf16.gmra.mrb[0].mxu0 %v763
        %v914 = vpop.f32.mrb[0].mxu0
        %v915 = vadd.f32 %v704, %v914
        %v916 = vpop.f32.mrb[0].mxu0
        %v917 = vadd.f32 %v708, %v916
        %v918 = vpop.f32.mrb[0].mxu0
        %v919 = vadd.f32 %v704, %v918
        %v920 = vpop.f32.mrb[0].mxu0
        %v921 = vadd.f32 %v708, %v920
        %922 = vmatprep.mubr.bf16.mxu0 0
        %923 = vmatmul.mubr.bf16.gmra.mrb[0].mxu0 %v766
        %v924 = vpop.f32.mrb[0].mxu0
        %v925 = vadd.f32 %v704, %v924
        %v926 = vpop.f32.mrb[0].mxu0
        %v927 = vadd.f32 %v708, %v926
        %v928 = vpop.f32.mrb[0].mxu0
        %v929 = vadd.f32 %v704, %v928
        %v930 = vpop.f32.mrb[0].mxu0
        %v931 = vadd.f32 %v708, %v930
        %932 = vmatprep.mubr.bf16.mxu0 0
        %933 = vmatmul.mubr.bf16.gmra.mrb[0].mxu0 %v769
        %v934 = vpop.f32.mrb[0].mxu0
        %v935 = vadd.f32 %v704, %v934
        %v936 = vpop.f32.mrb[0].mxu0
        %v937 = vadd.f32 %v708, %v936
        %v938 = vpop.f32.mrb[0].mxu0
        %v939 = vadd.f32 %v704, %v938
        %v940 = vpop.f32.mrb[0].mxu0
        %v941 = vadd.f32 %v708, %v940
        %942 = vmatprep.mubr.bf16.mxu0 0
        %943 = vmatmul.mubr.bf16.gmra.mrb[0].mxu0 %v772
        %v944 = vpop.f32.mrb[0].mxu0
        %v945 = vadd.f32 %v704, %v944
        %v946 = vpop.f32.mrb[0].mxu0
        %v947 = vadd.f32 %v708, %v946
        %v948 = vpop.f32.mrb[0].mxu0
        %v949 = vadd.f32 %v704, %v948
        %v950 = vpop.f32.mrb[0].mxu0
        %v951 = vadd.f32 %v708, %v950
        %952 = vmatprep.mubr.bf16.mxu0 0
        %953 = vmatmul.mubr.bf16.gmra.mrb[0].mxu0 %v775
        %v954 = vpop.f32.mrb[0].mxu0
        %v955 = vadd.f32 %v704, %v954
        %v956 = vpop.f32.mrb[0].mxu0
        %v957 = vadd.f32 %v708, %v956
        %v958 = vpop.f32.mrb[0].mxu0
        %v959 = vadd.f32 %v704, %v958
        %v960 = vpop.f32.mrb[0].mxu0
        %v961 = vadd.f32 %v708, %v960
        %962 = vmatprep.mubr.bf16.mxu0 0
        %963 = vmatmul.mubr.bf16.gmra.mrb[0].mxu0 %v778
        %v964 = vpop.f32.mrb[0].mxu0
        %v965 = vadd.f32 %v704, %v964
        %v966 = vpop.f32.mrb[0].mxu0
        %v967 = vadd.f32 %v708, %v966
        %v968 = vpop.f32.mrb[0].mxu0
        %v969 = vadd.f32 %v704, %v968
        %v970 = vpop.f32.mrb[0].mxu0
        %v971 = vadd.f32 %v708, %v970
        %972 = vdwg.mxu0
        %v973 = vld [vmem:[%s344] sm:$0xff]
        %v974 = vld [vmem:[%s344 + $0x8] sm:$0xff]
        %v975 = vld [vmem:[%s344 + $0x10] sm:$0xff]
        %v976 = vld [vmem:[%s344 + $0x18] sm:$0xff]
        %v977 = vld [vmem:[%s344 + $0x20] sm:$0xff]
        %v978 = vld [vmem:[%s344 + $0x28] sm:$0xff]
        %v979 = vld [vmem:[%s344 + $0x30] sm:$0xff]
        %v980 = vld [vmem:[%s344 + $0x38] sm:$0xff]
        %v981 = vld [vmem:[%s344 + $0x40] sm:$0xff]
        %v982 = vld [vmem:[%s344 + $0x48] sm:$0xff]
        %v983 = vld [vmem:[%s344 + $0x50] sm:$0xff]
        %v984 = vld [vmem:[%s344 + $0x58] sm:$0xff]
        %v985 = vld [vmem:[%s344 + $0x60] sm:$0xff]
        %v986 = vld [vmem:[%s344 + $0x68] sm:$0xff]
        %v987 = vld [vmem:[%s344 + $0x70] sm:$0xff]
        %v988 = vld [vmem:[%s344 + $0x78] sm:$0xff]
        %v989 = vld [vmem:[%s344 + $0x80] sm:$0xff]
        %v990 = vld [vmem:[%s344 + $0x88] sm:$0xff]
        %v991 = vld [vmem:[%s344 + $0x90] sm:$0xff]
        %v992 = vld [vmem:[%s344 + $0x98] sm:$0xff]
        %v993 = vld [vmem:[%s344 + $0xa0] sm:$0xff]
        %v994 = vld [vmem:[%s344 + $0xa8] sm:$0xff]
        %v995 = vld [vmem:[%s344 + $0xb0] sm:$0xff]
        %v996 = vld [vmem:[%s344 + $0xb8] sm:$0xff]
        %v997 = vld [vmem:[%s344 + $0xc0] sm:$0xff]
        %v998 = vld [vmem:[%s344 + $0xc8] sm:$0xff]
        %v999 = vld [vmem:[%s344 + $0xd0] sm:$0xff]
        %v1000 = vld [vmem:[%s344 + $0xd8] sm:$0xff]
        %v1001 = vld [vmem:[%s344 + $0xe0] sm:$0xff]
        %v1002 = vld [vmem:[%s344 + $0xe8] sm:$0xff]
        %v1003 = vld [vmem:[%s344 + $0xf0] sm:$0xff]
        %v1004 = vld [vmem:[%s344 + $0xf8] sm:$0xff]
        %v1005 = vmul.f32 %v817, 0.5
        %v1006 = vmul.f32 %v821, 0.5
        %v1007 = vmul.f32 %v827, 0.5
        %v1008 = vmul.f32 %v831, 0.5
        %v1009 = vmul.f32 %v837, 0.5
        %v1010 = vmul.f32 %v841, 0.5
        %v1011 = vmul.f32 %v847, 0.5
        %v1012 = vmul.f32 %v851, 0.5
        %v1013 = vmul.f32 %v857, 0.5
        %v1014 = vmul.f32 %v861, 0.5
        %v1015 = vmul.f32 %v867, 0.5
        %v1016 = vmul.f32 %v871, 0.5
        %v1017 = vmul.f32 %v877, 0.5
        %v1018 = vmul.f32 %v881, 0.5
        %v1019 = vmul.f32 %v887, 0.5
        %v1020 = vmul.f32 %v891, 0.5
        %v1021 = vmul.f32 %v897, 0.5
        %v1022 = vmul.f32 %v901, 0.5
        %v1023 = vmul.f32 %v907, 0.5
        %v1024 = vmul.f32 %v911, 0.5
        %v1025 = vmul.f32 %v917, 0.5
        %v1026 = vmul.f32 %v921, 0.5
        %v1027 = vmul.f32 %v927, 0.5
        %v1028 = vmul.f32 %v931, 0.5
        %v1029 = vmul.f32 %v937, 0.5
        %v1030 = vmul.f32 %v941, 0.5
        %v1031 = vmul.f32 %v947, 0.5
        %v1032 = vmul.f32 %v951, 0.5
        %v1033 = vmul.f32 %v957, 0.5
        %v1034 = vmul.f32 %v961, 0.5
        %v1035 = vmul.f32 %v967, 0.5
        %v1036 = vmul.f32 %v971, 0.5
        %v1037 = vmul.f32 %v1005, 1.442695
        %v1038 = vpow.pop %v1037
        %v1039 = vmul.f32 %v1006, 1.442695
        %v1040 = vpow.pop %v1039
        %v1041 = vmul.f32 %v1007, 1.442695
        %v1042 = vpow.pop %v1041
        %v1043 = vmul.f32 %v1008, 1.442695
        %v1044 = vpow.pop %v1043
        %v1045 = vmul.f32 %v1009, 1.442695
        %v1046 = vpow.pop %v1045
        %v1047 = vmul.f32 %v1010, 1.442695
        %v1048 = vpow.pop %v1047
        %v1049 = vmul.f32 %v1011, 1.442695
        %v1050 = vpow.pop %v1049
        %v1051 = vmul.f32 %v1012, 1.442695
        %v1052 = vpow.pop %v1051
        %v1053 = vmul.f32 %v1013, 1.442695
        %v1054 = vpow.pop %v1053
        %v1055 = vmul.f32 %v1014, 1.442695
        %v1056 = vpow.pop %v1055
        %v1057 = vmul.f32 %v1015, 1.442695
        %v1058 = vpow.pop %v1057
        %v1059 = vmul.f32 %v1016, 1.442695
        %v1060 = vpow.pop %v1059
        %v1061 = vmul.f32 %v1017, 1.442695
        %v1062 = vpow.pop %v1061
        %v1063 = vmul.f32 %v1018, 1.442695
        %v1064 = vpow.pop %v1063
        %v1065 = vmul.f32 %v1019, 1.442695
        %v1066 = vpow.pop %v1065
        %v1067 = vmul.f32 %v1020, 1.442695
        %v1068 = vpow.pop %v1067
        %v1069 = vmul.f32 %v1021, 1.442695
        %v1070 = vpow.pop %v1069
        %v1071 = vmul.f32 %v1022, 1.442695
        %v1072 = vpow.pop %v1071
        %v1073 = vmul.f32 %v1023, 1.442695
        %v1074 = vpow.pop %v1073
        %v1075 = vmul.f32 %v1024, 1.442695
        %v1076 = vpow.pop %v1075
        %v1077 = vmul.f32 %v1025, 1.442695
        %v1078 = vpow.pop %v1077
        %v1079 = vmul.f32 %v1026, 1.442695
        %v1080 = vpow.pop %v1079
        %v1081 = vmul.f32 %v1027, 1.442695
        %v1082 = vpow.pop %v1081
        %v1083 = vmul.f32 %v1028, 1.442695
        %v1084 = vpow.pop %v1083
        %v1085 = vmul.f32 %v1029, 1.442695
        %v1086 = vpow.pop %v1085
        %v1087 = vmul.f32 %v1030, 1.442695
        %v1088 = vpow.pop %v1087
        %v1089 = vmul.f32 %v1031, 1.442695
        %v1090 = vpow.pop %v1089
        %v1091 = vmul.f32 %v1032, 1.442695
        %v1092 = vpow.pop %v1091
        %v1093 = vmul.f32 %v1033, 1.442695
        %v1094 = vpow.pop %v1093
        %v1095 = vmul.f32 %v1034, 1.442695
        %v1096 = vpow.pop %v1095
        %v1097 = vmul.f32 %v1035, 1.442695
        %v1098 = vpow.pop %v1097
        %v1099 = vmul.f32 %v1036, 1.442695
        %v1100 = vpow.pop %v1099
        %v1101 = vmul.f32 %v973, %v1038
        %v1102 = vmul.f32 %v974, %v1040
        %v1103 = vmul.f32 %v975, %v1042
        %v1104 = vmul.f32 %v976, %v1044
        %v1105 = vmul.f32 %v977, %v1046
        %v1106 = vmul.f32 %v978, %v1048
        %v1107 = vmul.f32 %v979, %v1050
        %v1108 = vmul.f32 %v980, %v1052
        %v1109 = vmul.f32 %v981, %v1054
        %v1110 = vmul.f32 %v982, %v1056
        %v1111 = vmul.f32 %v983, %v1058
        %v1112 = vmul.f32 %v984, %v1060
        %v1113 = vmul.f32 %v985, %v1062
        %v1114 = vmul.f32 %v986, %v1064
        %v1115 = vmul.f32 %v987, %v1066
        %v1116 = vmul.f32 %v988, %v1068
        %v1117 = vmul.f32 %v989, %v1070
        %v1118 = vmul.f32 %v990, %v1072
        %v1119 = vmul.f32 %v991, %v1074
        %v1120 = vmul.f32 %v992, %v1076
        %v1121 = vmul.f32 %v993, %v1078
        %v1122 = vmul.f32 %v994, %v1080
        %v1123 = vmul.f32 %v995, %v1082
        %v1124 = vmul.f32 %v996, %v1084
        %v1125 = vmul.f32 %v997, %v1086
        %v1126 = vmul.f32 %v998, %v1088
        %v1127 = vmul.f32 %v999, %v1090
        %v1128 = vmul.f32 %v1000, %v1092
        %v1129 = vmul.f32 %v1001, %v1094
        %v1130 = vmul.f32 %v1002, %v1096
        %v1131 = vmul.f32 %v1003, %v1098
        %v1132 = vmul.f32 %v1004, %v1100
        %v1133 = vadd.f32 %v1101, %v815
        %v1134 = vadd.f32 %v1102, %v819
        %v1135 = vadd.f32 %v1103, %v825
        %v1136 = vadd.f32 %v1104, %v829
        %v1137 = vadd.f32 %v1105, %v835
        %v1138 = vadd.f32 %v1106, %v839
        %v1139 = vadd.f32 %v1107, %v845
        %v1140 = vadd.f32 %v1108, %v849
        %v1141 = vadd.f32 %v1109, %v855
        %v1142 = vadd.f32 %v1110, %v859
        %v1143 = vadd.f32 %v1111, %v865
        %v1144 = vadd.f32 %v1112, %v869
        %v1145 = vadd.f32 %v1113, %v875
        %v1146 = vadd.f32 %v1114, %v879
        %v1147 = vadd.f32 %v1115, %v885
        %v1148 = vadd.f32 %v1116, %v889
        %v1149 = vadd.f32 %v1117, %v895
        %v1150 = vadd.f32 %v1118, %v899
        %v1151 = vadd.f32 %v1119, %v905
        %v1152 = vadd.f32 %v1120, %v909
        %v1153 = vadd.f32 %v1121, %v915
        %v1154 = vadd.f32 %v1122, %v919
        %v1155 = vadd.f32 %v1123, %v925
        %v1156 = vadd.f32 %v1124, %v929
        %v1157 = vadd.f32 %v1125, %v935
        %v1158 = vadd.f32 %v1126, %v939
        %v1159 = vadd.f32 %v1127, %v945
        %v1160 = vadd.f32 %v1128, %v949
        %v1161 = vadd.f32 %v1129, %v955
        %v1162 = vadd.f32 %v1130, %v959
        %v1163 = vadd.f32 %v1131, %v965
        %v1164 = vadd.f32 %v1132, %v969
        %1165 = vst [vmem:[%s319] sm:$0xff] %v1133
        %1166 = vst [vmem:[%s319 + $0x8] sm:$0xff] %v1134
        %1167 = vst [vmem:[%s319 + $0x10] sm:$0xff] %v1135
        %1168 = vst [vmem:[%s319 + $0x18] sm:$0xff] %v1136
        %1169 = vst [vmem:[%s319 + $0x20] sm:$0xff] %v1137
        %1170 = vst [vmem:[%s319 + $0x28] sm:$0xff] %v1138
        %1171 = vst [vmem:[%s319 + $0x30] sm:$0xff] %v1139
        %1172 = vst [vmem:[%s319 + $0x38] sm:$0xff] %v1140
        %1173 = vst [vmem:[%s319 + $0x40] sm:$0xff] %v1141
        %1174 = vst [vmem:[%s319 + $0x48] sm:$0xff] %v1142
        %1175 = vst [vmem:[%s319 + $0x50] sm:$0xff] %v1143
        %1176 = vst [vmem:[%s319 + $0x58] sm:$0xff] %v1144
        %1177 = vst [vmem:[%s319 + $0x60] sm:$0xff] %v1145
        %1178 = vst [vmem:[%s319 + $0x68] sm:$0xff] %v1146
        %1179 = vst [vmem:[%s319 + $0x70] sm:$0xff] %v1147
        %1180 = vst [vmem:[%s319 + $0x78] sm:$0xff] %v1148
        %1181 = vst [vmem:[%s319 + $0x80] sm:$0xff] %v1149
        %1182 = vst [vmem:[%s319 + $0x88] sm:$0xff] %v1150
        %1183 = vst [vmem:[%s319 + $0x90] sm:$0xff] %v1151
        %1184 = vst [vmem:[%s319 + $0x98] sm:$0xff] %v1152
        %1185 = vst [vmem:[%s319 + $0xa0] sm:$0xff] %v1153
        %1186 = vst [vmem:[%s319 + $0xa8] sm:$0xff] %v1154
        %1187 = vst [vmem:[%s319 + $0xb0] sm:$0xff] %v1155
        %1188 = vst [vmem:[%s319 + $0xb8] sm:$0xff] %v1156
        %1189 = vst [vmem:[%s319 + $0xc0] sm:$0xff] %v1157
        %1190 = vst [vmem:[%s319 + $0xc8] sm:$0xff] %v1158
        %1191 = vst [vmem:[%s319 + $0xd0] sm:$0xff] %v1159
        %1192 = vst [vmem:[%s319 + $0xd8] sm:$0xff] %v1160
        %1193 = vst [vmem:[%s319 + $0xe0] sm:$0xff] %v1161
        %1194 = vst [vmem:[%s319 + $0xe8] sm:$0xff] %v1162
        %1195 = vst [vmem:[%s319 + $0xf0] sm:$0xff] %v1163
        %1196 = vst [vmem:[%s319 + $0xf8] sm:$0xff] %v1164
        %1197 = vst [vmem:[%s326] sm:$0xff] %v815
        %1198 = vst [vmem:[%s326 + $0x8] sm:$0xff] %v819
        %1199 = vst [vmem:[%s326 + $0x10] sm:$0xff] %v825
        %1200 = vst [vmem:[%s326 + $0x18] sm:$0xff] %v829
        %1201 = vst [vmem:[%s326 + $0x20] sm:$0xff] %v835
        %1202 = vst [vmem:[%s326 + $0x28] sm:$0xff] %v839
        %1203 = vst [vmem:[%s326 + $0x30] sm:$0xff] %v845
        %1204 = vst [vmem:[%s326 + $0x38] sm:$0xff] %v849
        %1205 = vst [vmem:[%s326 + $0x40] sm:$0xff] %v855
        %1206 = vst [vmem:[%s326 + $0x48] sm:$0xff] %v859
        %1207 = vst [vmem:[%s326 + $0x50] sm:$0xff] %v865
        %1208 = vst [vmem:[%s326 + $0x58] sm:$0xff] %v869
        %1209 = vst [vmem:[%s326 + $0x60] sm:$0xff] %v875
        %1210 = vst [vmem:[%s326 + $0x68] sm:$0xff] %v879
        %1211 = vst [vmem:[%s326 + $0x70] sm:$0xff] %v885
        %1212 = vst [vmem:[%s326 + $0x78] sm:$0xff] %v889
        %1213 = vst [vmem:[%s326 + $0x80] sm:$0xff] %v895
        %1214 = vst [vmem:[%s326 + $0x88] sm:$0xff] %v899
        %1215 = vst [vmem:[%s326 + $0x90] sm:$0xff] %v905
        %1216 = vst [vmem:[%s326 + $0x98] sm:$0xff] %v909
        %1217 = vst [vmem:[%s326 + $0xa0] sm:$0xff] %v915
        %1218 = vst [vmem:[%s326 + $0xa8] sm:$0xff] %v919
        %1219 = vst [vmem:[%s326 + $0xb0] sm:$0xff] %v925
        %1220 = vst [vmem:[%s326 + $0xb8] sm:$0xff] %v929
        %1221 = vst [vmem:[%s326 + $0xc0] sm:$0xff] %v935
        %1222 = vst [vmem:[%s326 + $0xc8] sm:$0xff] %v939
        %1223 = vst [vmem:[%s326 + $0xd0] sm:$0xff] %v945
        %1224 = vst [vmem:[%s326 + $0xd8] sm:$0xff] %v949
        %1225 = vst [vmem:[%s326 + $0xe0] sm:$0xff] %v955
        %1226 = vst [vmem:[%s326 + $0xe8] sm:$0xff] %v959
        %1227 = vst [vmem:[%s326 + $0xf0] sm:$0xff] %v965
        %1228 = vst [vmem:[%s326 + $0xf8] sm:$0xff] %v969
        %1229 = vst [vmem:[%s333] sm:$0xff] %v817
        %1230 = vst [vmem:[%s333 + $0x8] sm:$0xff] %v821
        %1231 = vst [vmem:[%s333 + $0x10] sm:$0xff] %v827
        %1232 = vst [vmem:[%s333 + $0x18] sm:$0xff] %v831
        %1233 = vst [vmem:[%s333 + $0x20] sm:$0xff] %v837
        %1234 = vst [vmem:[%s333 + $0x28] sm:$0xff] %v841
        %1235 = vst [vmem:[%s333 + $0x30] sm:$0xff] %v847
        %1236 = vst [vmem:[%s333 + $0x38] sm:$0xff] %v851
        %1237 = vst [vmem:[%s333 + $0x40] sm:$0xff] %v857
        %1238 = vst [vmem:[%s333 + $0x48] sm:$0xff] %v861
        %1239 = vst [vmem:[%s333 + $0x50] sm:$0xff] %v867
        %1240 = vst [vmem:[%s333 + $0x58] sm:$0xff] %v871
        %1241 = vst [vmem:[%s333 + $0x60] sm:$0xff] %v877
        %1242 = vst [vmem:[%s333 + $0x68] sm:$0xff] %v881
        %1243 = vst [vmem:[%s333 + $0x70] sm:$0xff] %v887
        %1244 = vst [vmem:[%s333 + $0x78] sm:$0xff] %v891
        %1245 = vst [vmem:[%s333 + $0x80] sm:$0xff] %v897
        %1246 = vst [vmem:[%s333 + $0x88] sm:$0xff] %v901
        %1247 = vst [vmem:[%s333 + $0x90] sm:$0xff] %v907
        %1248 = vst [vmem:[%s333 + $0x98] sm:$0xff] %v911
        %1249 = vst [vmem:[%s333 + $0xa0] sm:$0xff] %v917
        %1250 = vst [vmem:[%s333 + $0xa8] sm:$0xff] %v921
        %1251 = vst [vmem:[%s333 + $0xb0] sm:$0xff] %v927
        %1252 = vst [vmem:[%s333 + $0xb8] sm:$0xff] %v931
        %1253 = vst [vmem:[%s333 + $0xc0] sm:$0xff] %v937
        %1254 = vst [vmem:[%s333 + $0xc8] sm:$0xff] %v941
        %1255 = vst [vmem:[%s333 + $0xd0] sm:$0xff] %v947
        %1256 = vst [vmem:[%s333 + $0xd8] sm:$0xff] %v951
        %1257 = vst [vmem:[%s333 + $0xe0] sm:$0xff] %v957
        %1258 = vst [vmem:[%s333 + $0xe8] sm:$0xff] %v961
        %1259 = vst [vmem:[%s333 + $0xf0] sm:$0xff] %v967
        %1260 = vst [vmem:[%s333 + $0xf8] sm:$0xff] %v971
        %s1261 = sand.u32 %s170, 1
        %s1262 = scalar_lea.sflag [#allocation3], %s1261
        %s1263 = sand.u32 %s170, 1
        %s1264 = smul.addr %s1263, 256
        %s1265 = scalar_lea.vmem [#allocation2], %s1264
        %s1266 = sand.u32 %s26, 1
        %s1267 = scalar_lea.sflag [#allocation5], %s1266
        %s1268 = sand.u32 %s196, 1
        %s1269 = smul.addr %s1268, 256
        %s1270 = scalar_lea.vmem [#allocation4], %s1269
        %s1271 = sand.u32 %s26, 1
        %s1272 = scalar_lea.sflag [#allocation5], %s1271
        %s1273 = sand.u32 %s222, 1
        %s1274 = smul.addr %s1273, 256
        %s1275 = scalar_lea.vmem [#allocation6], %s1274
        // Predicated region
        $region45: #{tpu_custom_call.1} parent=43 // pred_check
          %p1276 = pneg %p180
        $region46: #{tpu_custom_call.1} parent=43 // pred_check_branch
          %1278 = sbr.rel (%p1276) target = $region48
        $region47: #{tpu_custom_call.1} parent=43 // pred_region
          %s1279 = smul.u32 32, %s26
          %s1281 = ssub.s32 4096, 4096
          %1282 = vsyncadd %s1262, %s1281
          %s1283 = smul.addr %s1279, 128
          %s1284 = scalar_lea.hbm %s6, %s1283
          %s1285 = sshll.u32 %s1265, 4
          %s1286 = int_to_ptr.vmem [resolvable:$true] %s1285
          %1291 = dma.vmem_to_hbm [thread:$0]  %s1286, 4096, %s1284, %s1262, 128, 128, 8
        $region48: #{tpu_custom_call.1} parent=43 // pred_fallthru
          _
        // Predicated region
        $region49: #{tpu_custom_call.1} parent=43 // pred_check
          %p1292 = pneg %p206
        $region50: #{tpu_custom_call.1} parent=43 // pred_check_branch
          %1294 = sbr.rel (%p1292) target = $region52
        $region51: #{tpu_custom_call.1} parent=43 // pred_region
          %s1295 = smul.u32 32, %s26
          %s1297 = ssub.s32 4096, 4096
          %1298 = vsyncadd %s1267, %s1297
          %s1299 = smul.addr %s1295, 128
          %s1300 = scalar_lea.hbm %s7, %s1299
          %s1301 = sshll.u32 %s1270, 4
          %s1302 = int_to_ptr.vmem [resolvable:$true] %s1301
          %1307 = dma.vmem_to_hbm [thread:$0]  %s1302, 4096, %s1300, %s1267, 128, 128, 8
        $region52: #{tpu_custom_call.1} parent=43 // pred_fallthru
          _
        // Predicated region
        $region53: #{tpu_custom_call.1} parent=43 // pred_check
          %p1308 = pneg %p232
        $region54: #{tpu_custom_call.1} parent=43 // pred_check_branch
          %1310 = sbr.rel (%p1308) target = $region56
        $region55: #{tpu_custom_call.1} parent=43 // pred_region
          %s1311 = smul.u32 32, %s26
          %s1313 = ssub.s32 4096, 4096
          %1314 = vsyncadd %s1272, %s1313
          %s1315 = smul.addr %s1311, 128
          %s1316 = scalar_lea.hbm %s8, %s1315
          %s1317 = sshll.u32 %s1275, 4
          %s1318 = int_to_ptr.vmem [resolvable:$true] %s1317
          %1323 = dma.vmem_to_hbm [thread:$0]  %s1318, 4096, %s1316, %s1272, 128, 128, 8
        $region56: #{tpu_custom_call.1} parent=43 // pred_fallthru
          _
      $region44: #{tpu_custom_call.1} parent=5 // pred_fallthru
        _
      %p1324 = scmp.le.s32.totalorder 2, %s21
      // Predicated region
      $region57: #{tpu_custom_call.1} parent=5 // pred_check
        %p1325 = pneg %p1324
      $region58: #{tpu_custom_call.1} parent=5 // pred_check_branch
        %1327 = sbr.rel (%p1325) target = $region60
      $region59: #{tpu_custom_call.1} parent=5 // pred_region
        %s1328 = ssub.s32 %s21, 2
        // Predicated region
        $region61: #{tpu_custom_call.1} parent=59 // pred_check
          %p1329 = pneg %p186
        $region62: #{tpu_custom_call.1} parent=59 // pred_check_branch
          %1331 = sbr.rel (%p1329) target = $region64
        $region63: #{tpu_custom_call.1} parent=59 // pred_region
          %s1332 = sand.u32 %s171, 1
          %s1333 = scalar_lea.sflag [#allocation3], %s1332
          %s1334 = sand.u32 %s171, 1
          %s1335 = smul.addr %s1334, 256
          %s1336 = scalar_lea.vmem [#allocation2], %s1335
          %1337 = dma.done %s1333, 4096
        $region64: #{tpu_custom_call.1} parent=59 // pred_fallthru
          _
        // Predicated region
        $region65: #{tpu_custom_call.1} parent=59 // pred_check
          %p1338 = pneg %p212
        $region66: #{tpu_custom_call.1} parent=59 // pred_check_branch
          %1340 = sbr.rel (%p1338) target = $region68
        $region67: #{tpu_custom_call.1} parent=59 // pred_region
          %s1341 = sand.u32 %s27, 1
          %s1342 = scalar_lea.sflag [#allocation5], %s1341
          %s1343 = sand.u32 %s197, 1
          %s1344 = smul.addr %s1343, 256
          %s1345 = scalar_lea.vmem [#allocation4], %s1344
          %1346 = dma.done %s1342, 4096
        $region68: #{tpu_custom_call.1} parent=59 // pred_fallthru
          _
        // Predicated region
        $region69: #{tpu_custom_call.1} parent=59 // pred_check
          %p1347 = pneg %p238
        $region70: #{tpu_custom_call.1} parent=59 // pred_check_branch
          %1349 = sbr.rel (%p1347) target = $region72
        $region71: #{tpu_custom_call.1} parent=59 // pred_region
          %s1350 = sand.u32 %s27, 1
          %s1351 = scalar_lea.sflag [#allocation5], %s1350
          %s1352 = sand.u32 %s223, 1
          %s1353 = smul.addr %s1352, 256
          %s1354 = scalar_lea.vmem [#allocation6], %s1353
          %1355 = dma.done %s1351, 4096
        $region72: #{tpu_custom_call.1} parent=59 // pred_fallthru
          _
      $region60: #{tpu_custom_call.1} parent=5 // pred_fallthru
        _
    $region6: #{tpu_custom_call.1} parent=1 // loop_footer
      %s25 = sadd.s32 1, %s21
    $region7: #{tpu_custom_call.1} parent=1 // loop_footer_branch
      %20 = sbr.rel target = $region3
    $region8: #{tpu_custom_call.1} parent=1 // loop_exit
      _
    %1356 = vsyncpa [#allocation3], 1
    %s1357 = scalar_lea.sflag [#allocation3], 1
    %1358 = vsyncpa %s1357, 1
    %1359 = vsyncpa [#allocation5], 1
    %s1360 = scalar_lea.sflag [#allocation5], 1
    %1361 = vsyncpa %s1360, 1

</llo_original>
